<compile_context>
chip_gen: v6e
topology: v6e:2x2x1
jax: 0.10.0
libtpu: 0.0.40
codegen_flags: <defaults>
</compile_context>

<pallas_src>
import math

import jax
import jax.numpy as jnp
from jax.experimental import pallas as pl
from jax.experimental.pallas import tpu as pltpu


def _attention_kernel(xt_ref, xs_ref, wq_ref, bq_ref, wkv_ref, bkv_ref, out_ref):
    xt = xt_ref[...]                       # (B, T, 2H)
    xs = xs_ref[...]                       # (B, S, H)
    B, T, twoH = xt.shape
    _, S, H = xs.shape
    scale = 1.0 / math.sqrt(H)             # trace-time constant

    # Fold batch into the row (sublane) dim: larger 2D matmuls for the MXU.
    xt2 = xt.reshape(B * T, twoH)          # (B*T, 2H)
    xs2 = xs.reshape(B * S, H)             # (B*S, H)

    # Q projection; 1/sqrt(H) folded in with a single in-kernel VPU multiply.
    q2 = jnp.dot(xt2, wq_ref[...], preferred_element_type=jnp.float32) + bq_ref[...]
    q2 = q2 * scale
    # Fused K|V projection: a single (B*S, H) @ (H, 2H) matmul.
    kv = jnp.dot(xs2, wkv_ref[...], preferred_element_type=jnp.float32) + bkv_ref[...]

    q = q2.reshape(B, T, H)
    k = kv[:, :H].reshape(B, S, H)
    v = kv[:, H:].reshape(B, S, H)

    # Scores: batched dot_general contracting the last dim of both operands
    # (no explicit transpose of K on the critical path).
    scores = jnp.einsum("btd,bsd->bts", q, k,
                        preferred_element_type=jnp.float32)      # (B, T, S)

    # Numerically stable softmax over the key axis.
    m = jnp.max(scores, axis=-1, keepdims=True)
    p = jnp.exp(scores - m)
    denom = jnp.sum(p, axis=-1, keepdims=True)
    attn = p * pl.reciprocal(denom, approx=True)                 # (B, T, S)

    out = jnp.einsum("bts,bsh->bth", attn, v,
                     preferred_element_type=jnp.float32)         # (B, T, H)
    out_ref[...] = out.astype(out_ref.dtype)
    # TODO(synk): output last dim is H=32 (<128 lanes) so the final store is masked;
    # at 2 KiB total a lane-dense (B, T*H) relayout is not worth the extra XLU work.


def stc_warehouse_forward(xs, xt, params):
    """xs: (B, S, H) spatial features; xt: (B, T, 2H) temporal features."""
    B, S, H = xs.shape
    _, T, _ = xt.shape

    # Fuse the K and V projections into a single matmul (tiny one-time concat).
    wkv = jnp.concatenate([params["wk"], params["wv"]], axis=1)  # (H, 2H)
    bkv = jnp.concatenate([params["bk"], params["bv"]], axis=1)  # (1, 2H)

    return pl.pallas_call(
        _attention_kernel,
        out_shape=jax.ShapeDtypeStruct((B, T, H), jnp.float32),
        grid=(1,),                                               # whole problem, one step
        in_specs=[
            pl.BlockSpec((B, T, 2 * H), lambda i: (0, 0, 0)),    # xt (queries)
            pl.BlockSpec((B, S, H), lambda i: (0, 0, 0)),        # xs (keys/values)
            pl.BlockSpec((2 * H, H), lambda i: (0, 0)),          # Wq
            pl.BlockSpec((1, H), lambda i: (0, 0)),              # bq
            pl.BlockSpec((H, 2 * H), lambda i: (0, 0)),          # Wk|Wv fused
            pl.BlockSpec((1, 2 * H), lambda i: (0, 0)),          # bk|bv fused
        ],
        out_specs=pl.BlockSpec((B, T, H), lambda i: (0, 0, 0)),
        compiler_params=pltpu.CompilerParams(
            dimension_semantics=("arbitrary",)),
    )(xt, xs, params["wq"], params["bq"], wkv, bkv)


def init_params(key, hidden):
    """Deterministic synthetic parameters matching the Attention shapes."""
    ks = jax.random.split(key, 6)
    scale_q = 1.0 / math.sqrt(2 * hidden)
    scale_kv = 1.0 / math.sqrt(hidden)
    return {
        "wq": jax.random.normal(ks[0], (2 * hidden, hidden), jnp.float32) * scale_q,
        "bq": jax.random.normal(ks[1], (1, hidden), jnp.float32) * 0.01,
        "wk": jax.random.normal(ks[2], (hidden, hidden), jnp.float32) * scale_kv,
        "bk": jax.random.normal(ks[3], (1, hidden), jnp.float32) * 0.01,
        "wv": jax.random.normal(ks[4], (hidden, hidden), jnp.float32) * scale_kv,
        "bv": jax.random.normal(ks[5], (1, hidden), jnp.float32) * 0.01,
    }


def _reference_forward(xs, xt, params):
    """Pure-JAX reference for correctness checking."""
    H = xs.shape[-1]
    q = jnp.einsum("btf,fh->bth", xt, params["wq"]) + params["bq"][0]
    k = jnp.einsum("bsf,fh->bsh", xs, params["wk"]) + params["bk"][0]
    v = jnp.einsum("bsf,fh->bsh", xs, params["wv"]) + params["bv"][0]
    scores = jnp.einsum("bth,bsh->bts", q, k) / math.sqrt(H)
    attn = jax.nn.softmax(scores, axis=-1)
    return jnp.einsum("bts,bsh->bth", attn, v)


if __name__ == "__main__":
    B, S, T, H = 2, 8, 8, 32  # batch, spatial seq, temporal seq, hidden_channels

    key = jax.random.PRNGKey(0)
    k_xs, k_xt, k_p = jax.random.split(key, 3)

    xs = jax.random.normal(k_xs, (B, S, H), jnp.float32)        # spatial features
    xt = jax.random.normal(k_xt, (B, T, 2 * H), jnp.float32)    # temporal features
    params = init_params(k_p, H)

    out = stc_warehouse_forward(xs, xt, params)
    out = jax.block_until_ready(out)

    ref = _reference_forward(xs, xt, params)
    assert out.shape == (B, T, H)
    # approx reciprocal in the softmax denominator -> slightly looser tolerance.
    assert jnp.allclose(out, ref, atol=2e-3, rtol=2e-3), "mismatch vs JAX reference"

    print("KERNEL_OK")
</pallas_src>

<mosaic_0001>
module attributes {stable_mosaic.version = 11 : i64} {
  func.func @_attention_kernel(%arg0: i32, %arg1: memref<2x8x64xf32, #tpu.memory_space<vmem>>, %arg2: memref<2x8x32xf32, #tpu.memory_space<vmem>>, %arg3: memref<64x32xf32, #tpu.memory_space<vmem>>, %arg4: memref<1x32xf32, #tpu.memory_space<vmem>>, %arg5: memref<32x64xf32, #tpu.memory_space<vmem>>, %arg6: memref<1x64xf32, #tpu.memory_space<vmem>>, %arg7: memref<2x8x32xf32, #tpu.memory_space<vmem>>) attributes {dimension_semantics = [#tpu.dimension_semantics<arbitrary>], iteration_bounds = array<i64: 1>, scalar_prefetch = 0 : i64, scratch_operands = 0 : i64, tpu.core_type = #tpu.core_type<tc>, window_params = [{pipeline_mode = #tpu.pipeline_mode<synchronous>, transform_indices = @transform_0, window_bounds = array<i64: 2, 8, 64>}, {pipeline_mode = #tpu.pipeline_mode<synchronous>, transform_indices = @transform_1, window_bounds = array<i64: 2, 8, 32>}, {pipeline_mode = #tpu.pipeline_mode<synchronous>, transform_indices = @transform_2, window_bounds = array<i64: 64, 32>}, {pipeline_mode = #tpu.pipeline_mode<synchronous>, transform_indices = @transform_3, window_bounds = array<i64: 1, 32>}, {pipeline_mode = #tpu.pipeline_mode<synchronous>, transform_indices = @transform_4, window_bounds = array<i64: 32, 64>}, {pipeline_mode = #tpu.pipeline_mode<synchronous>, transform_indices = @transform_5, window_bounds = array<i64: 1, 64>}, {pipeline_mode = #tpu.pipeline_mode<synchronous>, transform_indices = @transform_6, window_bounds = array<i64: 2, 8, 32>}]} {
    %c0 = arith.constant 0 : index
    %c0_0 = arith.constant 0 : index
    %c0_1 = arith.constant 0 : index
    %0 = vector.load %arg1[%c0, %c0_0, %c0_1] : memref<2x8x64xf32, #tpu.memory_space<vmem>>, vector<2x8x64xf32>
    %c0_2 = arith.constant 0 : index
    %c0_3 = arith.constant 0 : index
    %c0_4 = arith.constant 0 : index
    %1 = vector.load %arg2[%c0_2, %c0_3, %c0_4] : memref<2x8x32xf32, #tpu.memory_space<vmem>>, vector<2x8x32xf32>
    %2 = vector.shape_cast %0 : vector<2x8x64xf32> to vector<16x64xf32>
    %3 = vector.shape_cast %1 : vector<2x8x32xf32> to vector<16x32xf32>
    %c0_5 = arith.constant 0 : index
    %c0_6 = arith.constant 0 : index
    %4 = vector.load %arg3[%c0_5, %c0_6] : memref<64x32xf32, #tpu.memory_space<vmem>>, vector<64x32xf32>
    %cst = arith.constant dense<0.000000e+00> : vector<16x32xf32>
    %5 = tpu.matmul %2, %4, %cst {dimension_numbers = #tpu.dot_dimension_numbers<[1], [0], [0], [1], [0, 0, 1, 1], [], []>} : vector<16x64xf32>, vector<64x32xf32>, vector<16x32xf32> -> vector<16x32xf32>
    %c0_7 = arith.constant 0 : index
    %c0_8 = arith.constant 0 : index
    %6 = vector.load %arg4[%c0_7, %c0_8] : memref<1x32xf32, #tpu.memory_space<vmem>>, vector<1x32xf32>
    %7 = vector.broadcast %6 : vector<1x32xf32> to vector<16x32xf32>
    %8 = arith.addf %5, %7 : vector<16x32xf32>
    %cst_9 = arith.constant 0.176776692 : f32
    %9 = vector.broadcast %cst_9 : f32 to vector<16x32xf32>
    %10 = arith.mulf %8, %9 : vector<16x32xf32>
    %c0_10 = arith.constant 0 : index
    %c0_11 = arith.constant 0 : index
    %11 = vector.load %arg5[%c0_10, %c0_11] : memref<32x64xf32, #tpu.memory_space<vmem>>, vector<32x64xf32>
    %cst_12 = arith.constant dense<0.000000e+00> : vector<16x64xf32>
    %12 = tpu.matmul %3, %11, %cst_12 {dimension_numbers = #tpu.dot_dimension_numbers<[1], [0], [0], [1], [0, 0, 1, 1], [], []>} : vector<16x32xf32>, vector<32x64xf32>, vector<16x64xf32> -> vector<16x64xf32>
    %c0_13 = arith.constant 0 : index
    %c0_14 = arith.constant 0 : index
    %13 = vector.load %arg6[%c0_13, %c0_14] : memref<1x64xf32, #tpu.memory_space<vmem>>, vector<1x64xf32>
    %14 = vector.broadcast %13 : vector<1x64xf32> to vector<16x64xf32>
    %15 = arith.addf %12, %14 : vector<16x64xf32>
    %16 = vector.shape_cast %10 : vector<16x32xf32> to vector<2x8x32xf32>
    %17 = vector.extract_strided_slice %15 {offsets = [0, 0], sizes = [16, 32], strides = [1, 1]} : vector<16x64xf32> to vector<16x32xf32>
    %18 = vector.shape_cast %17 : vector<16x32xf32> to vector<2x8x32xf32>
    %19 = vector.extract_strided_slice %15 {offsets = [0, 32], sizes = [16, 32], strides = [1, 1]} : vector<16x64xf32> to vector<16x32xf32>
    %20 = vector.shape_cast %19 : vector<16x32xf32> to vector<2x8x32xf32>
    "tpu.trace_start"() <{level = 10 : i32, message = "btd,bsd->bts"}> : () -> ()
    %cst_15 = arith.constant dense<0.000000e+00> : vector<2x8x8xf32>
    %21 = tpu.matmul %16, %18, %cst_15 {dimension_numbers = #tpu.dot_dimension_numbers<[2], [2], [1], [1], [0, 0, 0, 1, 1, 1], [0], [0]>} : vector<2x8x32xf32>, vector<2x8x32xf32>, vector<2x8x8xf32> -> vector<2x8x8xf32>
    "tpu.trace_stop"() : () -> ()
    %cst_16 = arith.constant dense<0xFF800000> : vector<2x8xf32>
    %22 = vector.multi_reduction <maximumf>, %21, %cst_16 [2] : vector<2x8x8xf32> to vector<2x8xf32>
    %23 = vector.shape_cast %22 : vector<2x8xf32> to vector<2x8x1xf32>
    %24 = vector.broadcast %23 : vector<2x8x1xf32> to vector<2x8x8xf32>
    %25 = arith.subf %21, %24 : vector<2x8x8xf32>
    %26 = math.exp %25 : vector<2x8x8xf32>
    %cst_17 = arith.constant dense<0.000000e+00> : vector<2x8xf32>
    %27 = vector.multi_reduction <add>, %26, %cst_17 [2] : vector<2x8x8xf32> to vector<2x8xf32>
    %28 = vector.shape_cast %27 : vector<2x8xf32> to vector<2x8x1xf32>
    %29 = tpu.reciprocal %28 {approx = true} : vector<2x8x1xf32> -> vector<2x8x1xf32>
    %30 = vector.broadcast %29 : vector<2x8x1xf32> to vector<2x8x8xf32>
    %31 = arith.mulf %26, %30 : vector<2x8x8xf32>
    "tpu.trace_start"() <{level = 10 : i32, message = "bts,bsh->bth"}> : () -> ()
    %cst_18 = arith.constant dense<0.000000e+00> : vector<2x8x32xf32>
    %32 = tpu.matmul %31, %20, %cst_18 {dimension_numbers = #tpu.dot_dimension_numbers<[2], [1], [1], [2], [0, 0, 0, 1, 1, 2], [0], [0]>} : vector<2x8x8xf32>, vector<2x8x32xf32>, vector<2x8x32xf32> -> vector<2x8x32xf32>
    "tpu.trace_stop"() : () -> ()
    %c0_19 = arith.constant 0 : index
    %c0_20 = arith.constant 0 : index
    %c0_21 = arith.constant 0 : index
    %33 = vector.load %arg7[%c0_19, %c0_20, %c0_21] : memref<2x8x32xf32, #tpu.memory_space<vmem>>, vector<2x8x32xf32>
    tpu.vector_store %arg7[%c0_19, %c0_20, %c0_21], %32 {strides = array<i32>} : memref<2x8x32xf32, #tpu.memory_space<vmem>>, vector<2x8x32xf32>,
    return
  }
  func.func @transform_0(%arg0: i32) -> (i32, i32, i32) {
    %c0_i32 = arith.constant 0 : i32
    %c0_i32_0 = arith.constant 0 : i32
    %c0_i32_1 = arith.constant 0 : i32
    %c0_i32_2 = arith.constant 0 : i32
    return %c0_i32, %c0_i32_0, %c0_i32_1 : i32, i32, i32
  }
  func.func @transform_1(%arg0: i32) -> (i32, i32, i32) {
    %c0_i32 = arith.constant 0 : i32
    %c0_i32_0 = arith.constant 0 : i32
    %c0_i32_1 = arith.constant 0 : i32
    %c0_i32_2 = arith.constant 0 : i32
    return %c0_i32, %c0_i32_0, %c0_i32_1 : i32, i32, i32
  }
  func.func @transform_2(%arg0: i32) -> (i32, i32) {
    %c0_i32 = arith.constant 0 : i32
    %c0_i32_0 = arith.constant 0 : i32
    %c0_i32_1 = arith.constant 0 : i32
    return %c0_i32, %c0_i32_0 : i32, i32
  }
  func.func @transform_3(%arg0: i32) -> (i32, i32) {
    %c0_i32 = arith.constant 0 : i32
    %c0_i32_0 = arith.constant 0 : i32
    %c0_i32_1 = arith.constant 0 : i32
    return %c0_i32, %c0_i32_0 : i32, i32
  }
  func.func @transform_4(%arg0: i32) -> (i32, i32) {
    %c0_i32 = arith.constant 0 : i32
    %c0_i32_0 = arith.constant 0 : i32
    %c0_i32_1 = arith.constant 0 : i32
    return %c0_i32, %c0_i32_0 : i32, i32
  }
  func.func @transform_5(%arg0: i32) -> (i32, i32) {
    %c0_i32 = arith.constant 0 : i32
    %c0_i32_0 = arith.constant 0 : i32
    %c0_i32_1 = arith.constant 0 : i32
    return %c0_i32, %c0_i32_0 : i32, i32
  }
  func.func @transform_6(%arg0: i32) -> (i32, i32, i32) {
    %c0_i32 = arith.constant 0 : i32
    %c0_i32_0 = arith.constant 0 : i32
    %c0_i32_1 = arith.constant 0 : i32
    %c0_i32_2 = arith.constant 0 : i32
    return %c0_i32, %c0_i32_0, %c0_i32_1 : i32, i32, i32
  }
}

</mosaic_0001>

<llo_original>
// kernel: tpu_custom_call.1
$region0: #{tpu_custom_call.1}
  #allocation0 [shape = 'u32[]', space=smem, size = 0x4, offset = 0x4, fixed_abs, tag = 'smem constant byte address 0x4 - core index']
  #allocation1 [shape = 'u32[144,128]{1,0:T(1,128)}', space=vmem, size = 0x12000, scoped, tag = 'internal scratch']
  %s0 = inlined_call_operand.vmem [shape: f32[2,8,64], index: 0, kind: input, shape index: {}]
  %s1 = inlined_call_operand.vmem [shape: f32[2,8,32], index: 1, kind: input, shape index: {}]
  %s2 = inlined_call_operand.vmem [shape: f32[64,32], index: 2, kind: input, shape index: {}]
  %s3 = inlined_call_operand.vmem [shape: f32[1,32], index: 3, kind: input, shape index: {}]
  %s4 = inlined_call_operand.vmem [shape: f32[32,64], index: 4, kind: input, shape index: {}]
  %s5 = inlined_call_operand.vmem [shape: f32[1,64], index: 5, kind: input, shape index: {}]
  %s6 = inlined_call_operand.hbm [shape: f32[2,8,32], index: 6, kind: output, shape index: {}]
  %s7 = sld [smem:[#allocation0]]
  $region34: #{tpu_custom_call.1} parent=0
    _
  %s9 = ssub.s32 1, %s7
  %s10 = scalar_select 0, %s9, %s7
  $region1: #{tpu_custom_call.1} parent=0
    #allocation2 [shape = 'u8[8192]{0}', space=vmem, size = 0x2000, scoped, tag = 'output window, operand 0, single buffered']
    #allocation3 [shape = 's32[1]{0}', space=sflag, size = 0x4, scoped, tag = 'scoped memory for tpu_custom_call.1']
    %11 = vsyncpa [#allocation3], 0
    // Predicated region
    $region2: #{tpu_custom_call.1} parent=1 // pred_check
      _
    $region3: #{tpu_custom_call.1} parent=1 // pred_check_branch
      %13 = sbr.rel (0) target = $region5
    $region4: #{tpu_custom_call.1} parent=1 // pred_region
      _
    $region5: #{tpu_custom_call.1} parent=1 // pred_fallthru
      _
    // Predicated region
    $region6: #{tpu_custom_call.1} parent=1 // pred_check
      _
    $region7: #{tpu_custom_call.1} parent=1 // pred_check_branch
      %15 = sbr.rel (0) target = $region9
    $region8: #{tpu_custom_call.1} parent=1 // pred_region
      _
    $region9: #{tpu_custom_call.1} parent=1 // pred_fallthru
      _
    // Predicated region
    $region10: #{tpu_custom_call.1} parent=1 // pred_check
      _
    $region11: #{tpu_custom_call.1} parent=1 // pred_check_branch
      %17 = sbr.rel (0) target = $region13
    $region12: #{tpu_custom_call.1} parent=1 // pred_region
      _
    $region13: #{tpu_custom_call.1} parent=1 // pred_fallthru
      _
    // Predicated region
    $region14: #{tpu_custom_call.1} parent=1 // pred_check
      _
    $region15: #{tpu_custom_call.1} parent=1 // pred_check_branch
      %19 = sbr.rel (0) target = $region17
    $region16: #{tpu_custom_call.1} parent=1 // pred_region
      _
    $region17: #{tpu_custom_call.1} parent=1 // pred_fallthru
      _
    // Predicated region
    $region18: #{tpu_custom_call.1} parent=1 // pred_check
      _
    $region19: #{tpu_custom_call.1} parent=1 // pred_check_branch
      %21 = sbr.rel (0) target = $region21
    $region20: #{tpu_custom_call.1} parent=1 // pred_region
      _
    $region21: #{tpu_custom_call.1} parent=1 // pred_fallthru
      _
    // Predicated region
    $region22: #{tpu_custom_call.1} parent=1 // pred_check
      _
    $region23: #{tpu_custom_call.1} parent=1 // pred_check_branch
      %23 = sbr.rel (0) target = $region25
    $region24: #{tpu_custom_call.1} parent=1 // pred_region
      _
    $region25: #{tpu_custom_call.1} parent=1 // pred_fallthru
      _
    %v24 = vld [vmem:[%s0] sm:$0xff]
    %v25 = vld [vmem:[%s0 + $0x8] sm:$0xff]
    %v26 = vld [vmem:[%s1] sm:$0xff]
    %v27 = vld [vmem:[%s1 + $0x8] sm:$0xff]
    %v28 = vld [vmem:[%s2] sm:$0xff]
    %v29 = vld [vmem:[%s2 + $0x8] sm:$0xff]
    %v30 = vld [vmem:[%s2 + $0x10] sm:$0xff]
    %v31 = vld [vmem:[%s2 + $0x18] sm:$0xff]
    %v32 = vld [vmem:[%s2 + $0x20] sm:$0xff]
    %v33 = vld [vmem:[%s2 + $0x28] sm:$0xff]
    %v34 = vld [vmem:[%s2 + $0x30] sm:$0xff]
    %v35 = vld [vmem:[%s2 + $0x38] sm:$0xff]
    %v36 = vld [vmem:[%s3] sm:$0x1]
    %v38 = vlaneseq
    %v39 = vshrl.u32 %v38, 7
    %v40 = vsub.s32 0, %v39
    %v41 = vrot.slane %v36, %v40
    %vm43 = vcmask 523264
    %v45 = vsel %vm43, %v24, 0
    %v48 = vsel %vm43, %v25, 0
    %50 = vmatprep.subr.mxu0 0.0
    %51 = vmatpush1.msra.mxu0 0.0
    %52 = vmatprep.subr.mxu0 0.0
    %53 = vmatpush1.msra.mxu0 0.0
    %54 = vmatprep.subr.mxu0 0.0
    %55 = vmatpush1.msra.mxu0 0.0
    %56 = vmatprep.subr.mxu0 0.0
    %57 = vmatpush1.msra.mxu0 0.0
    %58 = vmatprep.subr.mxu0 0.0
    %59 = vmatpush1.msra.mxu0 0.0
    %60 = vmatprep.subr.mxu0 0.0
    %61 = vmatpush1.msra.mxu0 0.0
    %62 = vmatprep.subr.mxu0 0.0
    %63 = vmatpush1.msra.mxu0 0.0
    %64 = vmatprep.subr.mxu0 0.0
    %65 = vmatpush1.msra.mxu0 0.0
    %66 = vmatprep.subr.mxu0 0.0
    %67 = vmatpush1.msra.mxu0 %v35
    %68 = vmatprep.subr.mxu0 0.0
    %69 = vmatpush1.msra.mxu0 %v34
    %70 = vmatprep.subr.mxu0 0.0
    %71 = vmatpush1.msra.mxu0 %v33
    %72 = vmatprep.subr.mxu0 0.0
    %73 = vmatpush1.msra.mxu0 %v32
    %74 = vmatprep.subr.mxu0 0.0
    %75 = vmatpush1.msra.mxu0 %v31
    %76 = vmatprep.subr.mxu0 0.0
    %77 = vmatpush1.msra.mxu0 %v30
    %78 = vmatprep.subr.mxu0 0.0
    %79 = vmatpush1.msra.mxu0 %v29
    %80 = vmatprep.subr.mxu0 0.0
    %81 = vmatpush1.msra.mxu0 %v28
    %82 = vmatprep.subr.mxu0 0.0
    %83 = vmatpush2.msra.mxu0 0.0
    %84 = vmatprep.subr.mxu0 0.0
    %85 = vmatpush2.msra.mxu0 0.0
    %86 = vmatprep.subr.mxu0 0.0
    %87 = vmatpush2.msra.mxu0 0.0
    %88 = vmatprep.subr.mxu0 0.0
    %89 = vmatpush2.msra.mxu0 0.0
    %90 = vmatprep.subr.mxu0 0.0
    %91 = vmatpush2.msra.mxu0 0.0
    %92 = vmatprep.subr.mxu0 0.0
    %93 = vmatpush2.msra.mxu0 0.0
    %94 = vmatprep.subr.mxu0 0.0
    %95 = vmatpush2.msra.mxu0 0.0
    %96 = vmatprep.subr.mxu0 0.0
    %97 = vmatpush2.msra.mxu0 0.0
    %98 = vmatprep.subr.mxu0 0.0
    %99 = vmatpush2.msra.mxu0 0.0
    %100 = vmatprep.subr.mxu0 0.0
    %101 = vmatpush2.msra.mxu0 0.0
    %102 = vmatprep.subr.mxu0 0.0
    %103 = vmatpush2.msra.mxu0 0.0
    %104 = vmatprep.subr.mxu0 0.0
    %105 = vmatpush2.msra.mxu0 0.0
    %106 = vmatprep.subr.mxu0 0.0
    %107 = vmatpush2.msra.mxu0 0.0
    %108 = vmatprep.subr.mxu0 0.0
    %109 = vmatpush2.msra.mxu0 0.0
    %110 = vmatprep.subr.mxu0 0.0
    %111 = vmatpush2.msra.mxu0 0.0
    %112 = vmatprep.subr.mxu0 0.0
    %113 = vmatpush2.msra.mxu0 0.0
    %114 = vmatprep.mubr.f32.mxu0 0.0
    %115 = vmatmul.mubr.f32.gmra.mxu0 %v45
    %v116 = vpop.f32.mrf.mxu0
    %v117 = vadd.f32 %v41, %v116
    %v118 = vpop.f32.mrf.mxu0
    %119 = vmatprep.mubr.f32.mxu0 0.0
    %120 = vmatmul.mubr.f32.gmra.mxu0 %v48
    %v121 = vpop.f32.mrf.mxu0
    %v122 = vadd.f32 %v41, %v121
    %v123 = vpop.f32.mrf.mxu0
    %124 = vdwg.mxu0
    %v125 = vmul.f32 %v117, 0.17677669
    %v126 = vmul.f32 %v122, 0.17677669
    %v127 = vld [vmem:[%s4] sm:$0xff]
    %v128 = vld [vmem:[%s4 + $0x8] sm:$0xff]
    %v129 = vld [vmem:[%s4 + $0x10] sm:$0xff]
    %v130 = vld [vmem:[%s4 + $0x18] sm:$0xff]
    %v131 = vld [vmem:[%s5] sm:$0x1]
    %v133 = vlaneseq
    %v134 = vshrl.u32 %v133, 7
    %v135 = vsub.s32 0, %v134
    %v136 = vrot.slane %v131, %v135
    %vm138 = vcmask 261120
    %v140 = vsel %vm138, %v26, 0
    %v143 = vsel %vm138, %v27, 0
    %145 = vmatprep.subr.mxu0 0.0
    %146 = vmatpush1.msra.mxu0 0.0
    %147 = vmatprep.subr.mxu0 0.0
    %148 = vmatpush1.msra.mxu0 0.0
    %149 = vmatprep.subr.mxu0 0.0
    %150 = vmatpush1.msra.mxu0 0.0
    %151 = vmatprep.subr.mxu0 0.0
    %152 = vmatpush1.msra.mxu0 0.0
    %153 = vmatprep.subr.mxu0 0.0
    %154 = vmatpush1.msra.mxu0 0.0
    %155 = vmatprep.subr.mxu0 0.0
    %156 = vmatpush1.msra.mxu0 0.0
    %157 = vmatprep.subr.mxu0 0.0
    %158 = vmatpush1.msra.mxu0 0.0
    %159 = vmatprep.subr.mxu0 0.0
    %160 = vmatpush1.msra.mxu0 0.0
    %161 = vmatprep.subr.mxu0 0.0
    %162 = vmatpush1.msra.mxu0 0.0
    %163 = vmatprep.subr.mxu0 0.0
    %164 = vmatpush1.msra.mxu0 0.0
    %165 = vmatprep.subr.mxu0 0.0
    %166 = vmatpush1.msra.mxu0 0.0
    %167 = vmatprep.subr.mxu0 0.0
    %168 = vmatpush1.msra.mxu0 0.0
    %169 = vmatprep.subr.mxu0 0.0
    %170 = vmatpush1.msra.mxu0 %v130
    %171 = vmatprep.subr.mxu0 0.0
    %172 = vmatpush1.msra.mxu0 %v129
    %173 = vmatprep.subr.mxu0 0.0
    %174 = vmatpush1.msra.mxu0 %v128
    %175 = vmatprep.subr.mxu0 0.0
    %176 = vmatpush1.msra.mxu0 %v127
    %177 = vmatprep.subr.mxu0 0.0
    %178 = vmatpush2.msra.mxu0 0.0
    %179 = vmatprep.subr.mxu0 0.0
    %180 = vmatpush2.msra.mxu0 0.0
    %181 = vmatprep.subr.mxu0 0.0
    %182 = vmatpush2.msra.mxu0 0.0
    %183 = vmatprep.subr.mxu0 0.0
    %184 = vmatpush2.msra.mxu0 0.0
    %185 = vmatprep.subr.mxu0 0.0
    %186 = vmatpush2.msra.mxu0 0.0
    %187 = vmatprep.subr.mxu0 0.0
    %188 = vmatpush2.msra.mxu0 0.0
    %189 = vmatprep.subr.mxu0 0.0
    %190 = vmatpush2.msra.mxu0 0.0
    %191 = vmatprep.subr.mxu0 0.0
    %192 = vmatpush2.msra.mxu0 0.0
    %193 = vmatprep.subr.mxu0 0.0
    %194 = vmatpush2.msra.mxu0 0.0
    %195 = vmatprep.subr.mxu0 0.0
    %196 = vmatpush2.msra.mxu0 0.0
    %197 = vmatprep.subr.mxu0 0.0
    %198 = vmatpush2.msra.mxu0 0.0
    %199 = vmatprep.subr.mxu0 0.0
    %200 = vmatpush2.msra.mxu0 0.0
    %201 = vmatprep.subr.mxu0 0.0
    %202 = vmatpush2.msra.mxu0 0.0
    %203 = vmatprep.subr.mxu0 0.0
    %204 = vmatpush2.msra.mxu0 0.0
    %205 = vmatprep.subr.mxu0 0.0
    %206 = vmatpush2.msra.mxu0 0.0
    %207 = vmatprep.subr.mxu0 0.0
    %208 = vmatpush2.msra.mxu0 0.0
    %209 = vmatprep.mubr.f32.mxu0 0.0
    %210 = vmatmul.mubr.f32.gmra.mxu0 %v140
    %v211 = vpop.f32.mrf.mxu0
    %v212 = vadd.f32 %v136, %v211
    %v213 = vpop.f32.mrf.mxu0
    %214 = vmatprep.mubr.f32.mxu0 0.0
    %215 = vmatmul.mubr.f32.gmra.mxu0 %v143
    %v216 = vpop.f32.mrf.mxu0
    %v217 = vadd.f32 %v136, %v216
    %v218 = vpop.f32.mrf.mxu0
    %219 = vdwg.mxu0
    %v221 = vsel %vm138, %v125, 0
    %v224 = vsel %vm138, %v212, 0
    %226 = vmatprep.subr.mxu0 0.0
    %227 = vmatpush1.xpose.msra.mxu0 0.0
    %228 = vmatprep.subr.mxu0 0.0
    %229 = vmatpush1.xpose.msra.mxu0 0.0
    %230 = vmatprep.subr.mxu0 0.0
    %231 = vmatpush1.xpose.msra.mxu0 0.0
    %232 = vmatprep.subr.mxu0 0.0
    %233 = vmatpush1.xpose.msra.mxu0 0.0
    %234 = vmatprep.subr.mxu0 0.0
    %235 = vmatpush1.xpose.msra.mxu0 0.0
    %236 = vmatprep.subr.mxu0 0.0
    %237 = vmatpush1.xpose.msra.mxu0 0.0
    %238 = vmatprep.subr.mxu0 0.0
    %239 = vmatpush1.xpose.msra.mxu0 0.0
    %240 = vmatprep.subr.mxu0 0.0
    %241 = vmatpush1.xpose.msra.mxu0 0.0
    %242 = vmatprep.subr.mxu0 0.0
    %243 = vmatpush1.xpose.msra.mxu0 0.0
    %244 = vmatprep.subr.mxu0 0.0
    %245 = vmatpush1.xpose.msra.mxu0 0.0
    %246 = vmatprep.subr.mxu0 0.0
    %247 = vmatpush1.xpose.msra.mxu0 0.0
    %248 = vmatprep.subr.mxu0 0.0
    %249 = vmatpush1.xpose.msra.mxu0 0.0
    %250 = vmatprep.subr.mxu0 0.0
    %251 = vmatpush1.xpose.msra.mxu0 0.0
    %252 = vmatprep.subr.mxu0 0.0
    %253 = vmatpush1.xpose.msra.mxu0 0.0
    %254 = vmatprep.subr.mxu0 0.0
    %255 = vmatpush1.xpose.msra.mxu0 0.0
    %256 = vmatprep.subr.mxu0 0.0
    %257 = vmatpush1.xpose.msra.mxu0 %v224
    %258 = vmatprep.subr.mxu0 0.0
    %259 = vmatpush2.xpose.msra.mxu0 0.0
    %260 = vmatprep.subr.mxu0 0.0
    %261 = vmatpush2.xpose.msra.mxu0 0.0
    %262 = vmatprep.subr.mxu0 0.0
    %263 = vmatpush2.xpose.msra.mxu0 0.0
    %264 = vmatprep.subr.mxu0 0.0
    %265 = vmatpush2.xpose.msra.mxu0 0.0
    %266 = vmatprep.subr.mxu0 0.0
    %267 = vmatpush2.xpose.msra.mxu0 0.0
    %268 = vmatprep.subr.mxu0 0.0
    %269 = vmatpush2.xpose.msra.mxu0 0.0
    %270 = vmatprep.subr.mxu0 0.0
    %271 = vmatpush2.xpose.msra.mxu0 0.0
    %272 = vmatprep.subr.mxu0 0.0
    %273 = vmatpush2.xpose.msra.mxu0 0.0
    %274 = vmatprep.subr.mxu0 0.0
    %275 = vmatpush2.xpose.msra.mxu0 0.0
    %276 = vmatprep.subr.mxu0 0.0
    %277 = vmatpush2.xpose.msra.mxu0 0.0
    %278 = vmatprep.subr.mxu0 0.0
    %279 = vmatpush2.xpose.msra.mxu0 0.0
    %280 = vmatprep.subr.mxu0 0.0
    %281 = vmatpush2.xpose.msra.mxu0 0.0
    %282 = vmatprep.subr.mxu0 0.0
    %283 = vmatpush2.xpose.msra.mxu0 0.0
    %284 = vmatprep.subr.mxu0 0.0
    %285 = vmatpush2.xpose.msra.mxu0 0.0
    %286 = vmatprep.subr.mxu0 0.0
    %287 = vmatpush2.xpose.msra.mxu0 0.0
    %288 = vmatprep.subr.mxu0 0.0
    %289 = vmatpush2.xpose.msra.mxu0 0.0
    %290 = vmatprep.mubr.f32.mxu0 0.0
    %291 = vmatmul.mubr.f32.gmra.mxu0 %v221
    %v292 = vpop.f32.mrf.mxu0
    %v293 = vadd.f32 0.0, %v292
    %v294 = vpop.f32.mrf.mxu0
    %295 = vdwg.mxu0
    %v297 = vsel %vm138, %v126, 0
    %v300 = vsel %vm138, %v217, 0
    %302 = vmatprep.subr.mxu0 0.0
    %303 = vmatpush1.xpose.msra.mxu0 0.0
    %304 = vmatprep.subr.mxu0 0.0
    %305 = vmatpush1.xpose.msra.mxu0 0.0
    %306 = vmatprep.subr.mxu0 0.0
    %307 = vmatpush1.xpose.msra.mxu0 0.0
    %308 = vmatprep.subr.mxu0 0.0
    %309 = vmatpush1.xpose.msra.mxu0 0.0
    %310 = vmatprep.subr.mxu0 0.0
    %311 = vmatpush1.xpose.msra.mxu0 0.0
    %312 = vmatprep.subr.mxu0 0.0
    %313 = vmatpush1.xpose.msra.mxu0 0.0
    %314 = vmatprep.subr.mxu0 0.0
    %315 = vmatpush1.xpose.msra.mxu0 0.0
    %316 = vmatprep.subr.mxu0 0.0
    %317 = vmatpush1.xpose.msra.mxu0 0.0
    %318 = vmatprep.subr.mxu0 0.0
    %319 = vmatpush1.xpose.msra.mxu0 0.0
    %320 = vmatprep.subr.mxu0 0.0
    %321 = vmatpush1.xpose.msra.mxu0 0.0
    %322 = vmatprep.subr.mxu0 0.0
    %323 = vmatpush1.xpose.msra.mxu0 0.0
    %324 = vmatprep.subr.mxu0 0.0
    %325 = vmatpush1.xpose.msra.mxu0 0.0
    %326 = vmatprep.subr.mxu0 0.0
    %327 = vmatpush1.xpose.msra.mxu0 0.0
    %328 = vmatprep.subr.mxu0 0.0
    %329 = vmatpush1.xpose.msra.mxu0 0.0
    %330 = vmatprep.subr.mxu0 0.0
    %331 = vmatpush1.xpose.msra.mxu0 0.0
    %332 = vmatprep.subr.mxu0 0.0
    %333 = vmatpush1.xpose.msra.mxu0 %v300
    %334 = vmatprep.subr.mxu0 0.0
    %335 = vmatpush2.xpose.msra.mxu0 0.0
    %336 = vmatprep.subr.mxu0 0.0
    %337 = vmatpush2.xpose.msra.mxu0 0.0
    %338 = vmatprep.subr.mxu0 0.0
    %339 = vmatpush2.xpose.msra.mxu0 0.0
    %340 = vmatprep.subr.mxu0 0.0
    %341 = vmatpush2.xpose.msra.mxu0 0.0
    %342 = vmatprep.subr.mxu0 0.0
    %343 = vmatpush2.xpose.msra.mxu0 0.0
    %344 = vmatprep.subr.mxu0 0.0
    %345 = vmatpush2.xpose.msra.mxu0 0.0
    %346 = vmatprep.subr.mxu0 0.0
    %347 = vmatpush2.xpose.msra.mxu0 0.0
    %348 = vmatprep.subr.mxu0 0.0
    %349 = vmatpush2.xpose.msra.mxu0 0.0
    %350 = vmatprep.subr.mxu0 0.0
    %351 = vmatpush2.xpose.msra.mxu0 0.0
    %352 = vmatprep.subr.mxu0 0.0
    %353 = vmatpush2.xpose.msra.mxu0 0.0
    %354 = vmatprep.subr.mxu0 0.0
    %355 = vmatpush2.xpose.msra.mxu0 0.0
    %356 = vmatprep.subr.mxu0 0.0
    %357 = vmatpush2.xpose.msra.mxu0 0.0
    %358 = vmatprep.subr.mxu0 0.0
    %359 = vmatpush2.xpose.msra.mxu0 0.0
    %360 = vmatprep.subr.mxu0 0.0
    %361 = vmatpush2.xpose.msra.mxu0 0.0
    %362 = vmatprep.subr.mxu0 0.0
    %363 = vmatpush2.xpose.msra.mxu0 0.0
    %364 = vmatprep.subr.mxu0 0.0
    %365 = vmatpush2.xpose.msra.mxu0 0.0
    %366 = vmatprep.mubr.f32.mxu0 0.0
    %367 = vmatmul.mubr.f32.gmra.mxu0 %v297
    %v368 = vpop.f32.mrf.mxu0
    %v369 = vadd.f32 0.0, %v368
    %v370 = vpop.f32.mrf.mxu0
    %371 = vdwg.mxu0
    %vm372 = vcmask 64512
    %v373 = vsel %vm372, %v293, -inf
    %374 = vmax.xlane.f32.xlu0 %v373
    %v375 = vpop.xlane.xlu0 %374
    %v376 = vsel %vm372, %v369, -inf
    %377 = vmax.xlane.f32.xlu0 %v376
    %v378 = vpop.xlane.xlu0 %377
    %v379 = vsub.f32 %v293, %v375
    %v380 = vsub.f32 %v369, %v378
    %v381 = vmul.f32 %v379, 1.442695
    %v382 = vpow.pop %v381
    %v383 = vmul.f32 %v380, 1.442695
    %v384 = vpow.pop %v383
    %v385 = vsel %vm372, %v382, 0.0
    %386 = vadd.xlane.f32.xlu0 %v385
    %v387 = vpop.xlane.xlu0 %386
    %v388 = vsel %vm372, %v384, 0.0
    %389 = vadd.xlane.f32.xlu0 %v388
    %v390 = vpop.xlane.xlu0 %389
    %v391 = vrcp.pop %v387
    %v392 = vrcp.pop %v390
    %v393 = vmul.f32 %v382, %v391
    %v394 = vmul.f32 %v384, %v392
    %395 = vrot.lane.b32.xlu0 %v212, 96
    %v396 = vpop.permute.xlu0 %395
    %v399 = vsel %vm372, %v393, 0
    %401 = vmatprep.subr.mxu0 0.0
    %402 = vmatpush1.msra.mxu0 0.0
    %403 = vmatprep.subr.mxu0 0.0
    %404 = vmatpush1.msra.mxu0 0.0
    %405 = vmatprep.subr.mxu0 0.0
    %406 = vmatpush1.msra.mxu0 0.0
    %407 = vmatprep.subr.mxu0 0.0
    %408 = vmatpush1.msra.mxu0 0.0
    %409 = vmatprep.subr.mxu0 0.0
    %410 = vmatpush1.msra.mxu0 0.0
    %411 = vmatprep.subr.mxu0 0.0
    %412 = vmatpush1.msra.mxu0 0.0
    %413 = vmatprep.subr.mxu0 0.0
    %414 = vmatpush1.msra.mxu0 0.0
    %415 = vmatprep.subr.mxu0 0.0
    %416 = vmatpush1.msra.mxu0 0.0
    %417 = vmatprep.subr.mxu0 0.0
    %418 = vmatpush1.msra.mxu0 0.0
    %419 = vmatprep.subr.mxu0 0.0
    %420 = vmatpush1.msra.mxu0 0.0
    %421 = vmatprep.subr.mxu0 0.0
    %422 = vmatpush1.msra.mxu0 0.0
    %423 = vmatprep.subr.mxu0 0.0
    %424 = vmatpush1.msra.mxu0 0.0
    %425 = vmatprep.subr.mxu0 0.0
    %426 = vmatpush1.msra.mxu0 0.0
    %427 = vmatprep.subr.mxu0 0.0
    %428 = vmatpush1.msra.mxu0 0.0
    %429 = vmatprep.subr.mxu0 0.0
    %430 = vmatpush1.msra.mxu0 0.0
    %431 = vmatprep.subr.mxu0 0.0
    %432 = vmatpush1.msra.mxu0 %v396
    %433 = vmatprep.subr.mxu0 0.0
    %434 = vmatpush2.msra.mxu0 0.0
    %435 = vmatprep.subr.mxu0 0.0
    %436 = vmatpush2.msra.mxu0 0.0
    %437 = vmatprep.subr.mxu0 0.0
    %438 = vmatpush2.msra.mxu0 0.0
    %439 = vmatprep.subr.mxu0 0.0
    %440 = vmatpush2.msra.mxu0 0.0
    %441 = vmatprep.subr.mxu0 0.0
    %442 = vmatpush2.msra.mxu0 0.0
    %443 = vmatprep.subr.mxu0 0.0
    %444 = vmatpush2.msra.mxu0 0.0
    %445 = vmatprep.subr.mxu0 0.0
    %446 = vmatpush2.msra.mxu0 0.0
    %447 = vmatprep.subr.mxu0 0.0
    %448 = vmatpush2.msra.mxu0 0.0
    %449 = vmatprep.subr.mxu0 0.0
    %450 = vmatpush2.msra.mxu0 0.0
    %451 = vmatprep.subr.mxu0 0.0
    %452 = vmatpush2.msra.mxu0 0.0
    %453 = vmatprep.subr.mxu0 0.0
    %454 = vmatpush2.msra.mxu0 0.0
    %455 = vmatprep.subr.mxu0 0.0
    %456 = vmatpush2.msra.mxu0 0.0
    %457 = vmatprep.subr.mxu0 0.0
    %458 = vmatpush2.msra.mxu0 0.0
    %459 = vmatprep.subr.mxu0 0.0
    %460 = vmatpush2.msra.mxu0 0.0
    %461 = vmatprep.subr.mxu0 0.0
    %462 = vmatpush2.msra.mxu0 0.0
    %463 = vmatprep.subr.mxu0 0.0
    %464 = vmatpush2.msra.mxu0 0.0
    %465 = vmatprep.mubr.f32.mxu0 0.0
    %466 = vmatmul.mubr.f32.gmra.mxu0 %v399
    %v467 = vpop.f32.mrf.mxu0
    %v468 = vadd.f32 0.0, %v467
    %v469 = vpop.f32.mrf.mxu0
    %470 = vdwg.mxu0
    %471 = vrot.lane.b32.xlu0 %v217, 96
    %v472 = vpop.permute.xlu0 %471
    %v475 = vsel %vm372, %v394, 0
    %477 = vmatprep.subr.mxu0 0.0
    %478 = vmatpush1.msra.mxu0 0.0
    %479 = vmatprep.subr.mxu0 0.0
    %480 = vmatpush1.msra.mxu0 0.0
    %481 = vmatprep.subr.mxu0 0.0
    %482 = vmatpush1.msra.mxu0 0.0
    %483 = vmatprep.subr.mxu0 0.0
    %484 = vmatpush1.msra.mxu0 0.0
    %485 = vmatprep.subr.mxu0 0.0
    %486 = vmatpush1.msra.mxu0 0.0
    %487 = vmatprep.subr.mxu0 0.0
    %488 = vmatpush1.msra.mxu0 0.0
    %489 = vmatprep.subr.mxu0 0.0
    %490 = vmatpush1.msra.mxu0 0.0
    %491 = vmatprep.subr.mxu0 0.0
    %492 = vmatpush1.msra.mxu0 0.0
    %493 = vmatprep.subr.mxu0 0.0
    %494 = vmatpush1.msra.mxu0 0.0
    %495 = vmatprep.subr.mxu0 0.0
    %496 = vmatpush1.msra.mxu0 0.0
    %497 = vmatprep.subr.mxu0 0.0
    %498 = vmatpush1.msra.mxu0 0.0
    %499 = vmatprep.subr.mxu0 0.0
    %500 = vmatpush1.msra.mxu0 0.0
    %501 = vmatprep.subr.mxu0 0.0
    %502 = vmatpush1.msra.mxu0 0.0
    %503 = vmatprep.subr.mxu0 0.0
    %504 = vmatpush1.msra.mxu0 0.0
    %505 = vmatprep.subr.mxu0 0.0
    %506 = vmatpush1.msra.mxu0 0.0
    %507 = vmatprep.subr.mxu0 0.0
    %508 = vmatpush1.msra.mxu0 %v472
    %509 = vmatprep.subr.mxu0 0.0
    %510 = vmatpush2.msra.mxu0 0.0
    %511 = vmatprep.subr.mxu0 0.0
    %512 = vmatpush2.msra.mxu0 0.0
    %513 = vmatprep.subr.mxu0 0.0
    %514 = vmatpush2.msra.mxu0 0.0
    %515 = vmatprep.subr.mxu0 0.0
    %516 = vmatpush2.msra.mxu0 0.0
    %517 = vmatprep.subr.mxu0 0.0
    %518 = vmatpush2.msra.mxu0 0.0
    %519 = vmatprep.subr.mxu0 0.0
    %520 = vmatpush2.msra.mxu0 0.0
    %521 = vmatprep.subr.mxu0 0.0
    %522 = vmatpush2.msra.mxu0 0.0
    %523 = vmatprep.subr.mxu0 0.0
    %524 = vmatpush2.msra.mxu0 0.0
    %525 = vmatprep.subr.mxu0 0.0
    %526 = vmatpush2.msra.mxu0 0.0
    %527 = vmatprep.subr.mxu0 0.0
    %528 = vmatpush2.msra.mxu0 0.0
    %529 = vmatprep.subr.mxu0 0.0
    %530 = vmatpush2.msra.mxu0 0.0
    %531 = vmatprep.subr.mxu0 0.0
    %532 = vmatpush2.msra.mxu0 0.0
    %533 = vmatprep.subr.mxu0 0.0
    %534 = vmatpush2.msra.mxu0 0.0
    %535 = vmatprep.subr.mxu0 0.0
    %536 = vmatpush2.msra.mxu0 0.0
    %537 = vmatprep.subr.mxu0 0.0
    %538 = vmatpush2.msra.mxu0 0.0
    %539 = vmatprep.subr.mxu0 0.0
    %540 = vmatpush2.msra.mxu0 0.0
    %541 = vmatprep.mubr.f32.mxu0 0.0
    %542 = vmatmul.mubr.f32.gmra.mxu0 %v475
    %v543 = vpop.f32.mrf.mxu0
    %v544 = vadd.f32 0.0, %v543
    %v545 = vpop.f32.mrf.mxu0
    %546 = vdwg.mxu0
    %547 = vst.msk [vmem:[#allocation2] sm:$0xff] %vm138, %v468
    %548 = vst.msk [vmem:[#allocation2 + $0x8] sm:$0xff] %vm138, %v544
    // Predicated region
    $region26: #{tpu_custom_call.1} parent=1 // pred_check
      _
    $region27: #{tpu_custom_call.1} parent=1 // pred_check_branch
      %550 = sbr.rel (0) target = $region29
    $region28: #{tpu_custom_call.1} parent=1 // pred_region
      %s552 = ssub.s32 256, 256
      %553 = vsyncadd [#allocation3], %s552
      %s554 = sshll.u32 [#allocation2], 4
      %s555 = int_to_ptr.vmem [resolvable:$true] %s554
      %560 = dma.vmem_to_hbm [thread:$0]  %s555, 256, %s6, [#allocation3], 128, 128, 8
    $region29: #{tpu_custom_call.1} parent=1 // pred_fallthru
      _
    // Predicated region
    $region30: #{tpu_custom_call.1} parent=1 // pred_check
      _
    $region31: #{tpu_custom_call.1} parent=1 // pred_check_branch
      %562 = sbr.rel (0) target = $region33
    $region32: #{tpu_custom_call.1} parent=1 // pred_region
      %563 = dma.done [#allocation3], 256
    $region33: #{tpu_custom_call.1} parent=1 // pred_fallthru
      _
    %564 = vsyncpa [#allocation3], 1

</llo_original>
